<compile_context>
chip_gen: v5e
topology: v5e:2x2
jax: 0.10.0
libtpu: 0.0.40
codegen_flags: <defaults>
</compile_context>

<pallas_src>
import math

import numpy as np
import jax
import jax.numpy as jnp
from jax.experimental import pallas as pl
from jax.experimental.pallas import tpu as pltpu

_LANES = 128


# ----------------------------------------------------------------------------
# Pallas kernel: 3x3 Laplacian (zero-padded) + 0.1 threshold on a packed slab
# ----------------------------------------------------------------------------
def _boundary_kernel(xp_ref, o_ref):
    # xp_ref: (Rb, L) bf16 — lane-packed, zero-separated mask slab
    #                        (Rb = Bg*(H+2) flattened group rows, L = k*128)
    # o_ref : (Rb, L) f32  — binarized boundary; pad rows/cols hold garbage
    #                        that the host-side unpack discards.
    p = xp_ref[...].astype(jnp.float32)
    rows, lanes = p.shape
    # Separable 3x3 box sum via XLU rotations.  Wrap-around contributions only
    # land in per-stripe / per-group zero-pad positions (discarded outputs).
    row3 = p + pltpu.roll(p, shift=1, axis=1) + pltpu.roll(p, shift=lanes - 1, axis=1)
    box3 = row3 + pltpu.roll(row3, shift=1, axis=0) + pltpu.roll(row3, shift=rows - 1, axis=0)
    # Laplacian [-1,-1,-1,-1,8,-1,-1,-1,-1] response == 9*center - box3x3.
    # clamp(min=0) is redundant before the > 0.1 threshold.
    o_ref[...] = jnp.where(9.0 * p - box3 > 0.1, 1.0, 0.0).astype(o_ref.dtype)


def _vmem_budget_and_limit():
    """Generation-aware (soft budget, scoped limit) in bytes."""
    try:
        cap = getattr(pltpu.get_tpu_info(), "vmem_capacity_bytes", None) or (64 << 20)
    except Exception:  # pragma: no cover — conservative fallback (v7x per-TC)
        cap = 64 << 20
    budget = min(cap // 4, 16 << 20)      # live working set per grid step
    limit = int(min(cap // 2, 64 << 20))  # scoped VMEM limit (headroom over budget)
    return budget, limit


@jax.jit
def _boundary_pallas(masks):
    """masks: (N, H, W) float/bool -> (N, H, W) float32 binary boundary maps."""
    N, H, W = masks.shape
    SW = W + 2                                   # per-instance lane stripe: [W data | 2 zeros]
    if SW <= _LANES:
        P = _LANES // SW                         # instances packed per lane row
        L = _LANES
    else:                                        # very wide masks: one instance per row
        P = 1
        L = pl.cdiv(SW, _LANES) * _LANES

    G = pl.cdiv(N, P)                            # groups of P instances
    budget, vmem_limit = _vmem_budget_and_limit()
    # Per-group bytes: double-buffered bf16 input + f32 output blocks plus ~5
    # block-sized f32 temps materialized inside the kernel (p, rolls, row3, box3).
    bytes_per_group = (H + 2) * L * (2 * 2 + 2 * 4 + 5 * 4)
    steps = max(2 if G >= 2 else 1, pl.cdiv(G * bytes_per_group, budget))
    Bg = pl.cdiv(G, steps)
    # Block rows Bg*(H+2) must be a multiple of 16 sublanes (f32 + bf16 tiles),
    # unless the block covers the full array (single-step case below).
    align = 16 // math.gcd(H + 2, 16)
    Bg = pl.cdiv(Bg, align) * align
    if Bg >= G:
        Bg = G                                   # single full-array block (alignment-exempt)
    Gp = pl.cdiv(G, Bg) * Bg                     # pad group count to a Bg multiple

    # ---- pack: (N, H, W) -> (Gp*(H+2), L), bf16, zero borders folded in -----
    x = jnp.pad(masks.astype(jnp.bfloat16), ((0, Gp * P - N), (0, 0), (0, 0)))
    x = x.reshape(Gp, P, H, W).transpose(0, 2, 1, 3)                # (Gp, H, P, W)
    x = jnp.pad(x, ((0, 0), (1, 1), (0, 0), (0, SW - W)))           # zero rows + stripe cols
    x = x.reshape(Gp, H + 2, P * SW)
    if P * SW < L:
        x = jnp.pad(x, ((0, 0), (0, 0), (0, L - P * SW)))           # zero tail lanes
    x = x.reshape(Gp * (H + 2), L)

    out = pl.pallas_call(
        _boundary_kernel,
        out_shape=jax.ShapeDtypeStruct((Gp * (H + 2), L), jnp.float32),
        grid=(Gp // Bg,),
        in_specs=[pl.BlockSpec((Bg * (H + 2), L), lambda g: (g, 0))],
        out_specs=pl.BlockSpec((Bg * (H + 2), L), lambda g: (g, 0)),
        compiler_params=pltpu.CompilerParams(
            dimension_semantics=("parallel",),
            vmem_limit_bytes=vmem_limit),
    )(x)

    # ---- unpack: (Gp*(H+2), L) -> (N, H, W); pure slicing + one transpose ---
    out = out.reshape(Gp, H + 2, L)[:, 1:H + 1, :P * SW]            # drop pad rows / tail lanes
    out = out.reshape(Gp, H, P, SW)[:, :, :, :W]                    # drop per-stripe pad cols
    out = out.transpose(0, 2, 1, 3).reshape(Gp * P, H, W)[:N]
    return out


# ----------------------------------------------------------------------------
# Module
# ----------------------------------------------------------------------------
class ClippingStrategy:
    def __init__(self, resolutions, is_boundary=False):
        # register_buffer('laplacian', ...) — kept for parity / the reference;
        # the kernel hardcodes it as 9*center - box3x3.
        self.laplacian = jnp.array(
            [-1, -1, -1, -1, 8, -1, -1, -1, -1], dtype=jnp.float32).reshape(1, 1, 3, 3)
        self.is_boundary = is_boundary
        self.side_lengths = np.array(resolutions).reshape(-1, 2)

    def _extract_target_boundary(self, masks, shape):
        # masks: (N, H, W) float32
        b = _boundary_pallas(masks)                    # (N, H, W) f32 {0,1}
        b = b[:, None, :, :]                           # unsqueeze(1) -> (N,1,H,W)
        if b.shape[-2:] != tuple(shape):
            Ho, Wo = int(shape[0]), int(shape[1])
            Hi, Wi = b.shape[-2:]
            if Hi % Ho == 0 and Wi % Wo == 0:
                # integral downscale: strided slice == floor-nearest indexing
                b = b[:, :, :: Hi // Ho, :: Wi // Wo]
            else:
                # general nearest (floor) as a single combined gather
                ri = (jnp.arange(Ho) * Hi // Ho).astype(jnp.int32)
                ci = (jnp.arange(Wo) * Wi // Wo).astype(jnp.int32)
                b = b[:, :, ri[:, None], ci[None, :]]
        return b

    def forward(self, instances, clip_boxes=None, lid=0):
        # `instances` here: list of per-image pre-rasterized gt mask arrays of
        # shape (num_inst_i, S, S) with S == self.side_lengths[lid][0].
        # TODO(synk): polygon crop_and_resize / rasterize_no_crop (detectron2
        # BitMasks/PolygonMasks ops) have no Pallas equivalent; masks are taken
        # as already-rasterized inputs.
        gt_masks = [m for m in instances if m.shape[0] > 0]
        return jnp.concatenate(gt_masks, axis=0)       # (sum_i N_i, S, S)


# ----------------------------------------------------------------------------
# Pure-JAX reference for the kernel path (correctness check)
# ----------------------------------------------------------------------------
def _boundary_ref(masks, lap):
    x = masks[:, None, :, :]                           # NCHW, C=1
    y = jax.lax.conv_general_dilated(
        x, lap, window_strides=(1, 1), padding=((1, 1), (1, 1)),
        dimension_numbers=("NCHW", "OIHW", "NCHW"))
    y = jnp.maximum(y, 0.0)
    y = jnp.where(y > 0.1, 1.0, 0.0)
    return y[:, 0]


if __name__ == "__main__":
    key = jax.random.PRNGKey(0)
    S = 16                                             # side_lengths[lid][0]
    strategy = ClippingStrategy(resolutions=[[S, S], [2 * S, 2 * S]],
                                is_boundary=True)

    # two "images": 3 and 2 instances, binary gt masks rasterized to (S, S)
    k0, k1 = jax.random.split(key)
    inst0 = (jax.random.uniform(k0, (3, S, S)) > 0.5).astype(jnp.float32)
    inst1 = (jax.random.uniform(k1, (2, S, S)) > 0.5).astype(jnp.float32)

    gt_masks = strategy.forward([inst0, inst1], clip_boxes=None, lid=0)   # (5, S, S)

    # boundary-target extraction — the Pallas kernel hot path
    boundary = strategy._extract_target_boundary(gt_masks, (S, S))        # (5,1,S,S)
    boundary = jax.block_until_ready(boundary)

    ref = _boundary_ref(gt_masks, strategy.laplacian)
    np.testing.assert_allclose(np.asarray(boundary[:, 0]), np.asarray(ref),
                               rtol=0, atol=0)
    assert boundary.shape == (5, 1, S, S)
    assert boundary.dtype == jnp.float32

    # also exercise the nearest-resize branch (integral ratio -> strided slice)
    boundary_small = strategy._extract_target_boundary(gt_masks, (S // 2, S // 2))
    boundary_small = jax.block_until_ready(boundary_small)
    idx = (np.arange(S // 2) * S // (S // 2)).astype(np.int32)
    ref_small = np.asarray(ref)[:, idx][:, :, idx]
    np.testing.assert_allclose(np.asarray(boundary_small[:, 0]), ref_small,
                               rtol=0, atol=0)
    assert boundary_small.shape == (5, 1, S // 2, S // 2)

    print("KERNEL_OK")
</pallas_src>

<mosaic_0001>
module attributes {stable_mosaic.version = 11 : i64} {
  func.func @_boundary_kernel(%arg0: i32, %arg1: memref<18x128xbf16, #tpu.memory_space<vmem>>, %arg2: memref<18x128xf32, #tpu.memory_space<vmem>>) attributes {dimension_semantics = [#tpu.dimension_semantics<parallel>], iteration_bounds = array<i64: 1>, scalar_prefetch = 0 : i64, scratch_operands = 0 : i64, tpu.core_type = #tpu.core_type<tc>, window_params = [{transform_indices = @transform_0, window_bounds = array<i64: 18, 128>}, {transform_indices = @transform_1, window_bounds = array<i64: 18, 128>}]} {
    %c0 = arith.constant 0 : index
    %c0_0 = arith.constant 0 : index
    %0 = vector.load %arg1[%c0, %c0_0] : memref<18x128xbf16, #tpu.memory_space<vmem>>, vector<18x128xbf16>
    %1 = arith.extf %0 : vector<18x128xbf16> to vector<18x128xf32>
    %c1_i32 = arith.constant 1 : i32
    %2 = tpu.dynamic_rotate %1 by %c1_i32 dim 1 : vector<18x128xf32>, i32 -> vector<18x128xf32>
    %3 = arith.addf %1, %2 : vector<18x128xf32>
    %c127_i32 = arith.constant 127 : i32
    %4 = tpu.dynamic_rotate %1 by %c127_i32 dim 1 : vector<18x128xf32>, i32 -> vector<18x128xf32>
    %5 = arith.addf %3, %4 : vector<18x128xf32>
    %c1_i32_1 = arith.constant 1 : i32
    %6 = tpu.dynamic_rotate %5 by %c1_i32_1 dim 0 : vector<18x128xf32>, i32 -> vector<18x128xf32>
    %7 = arith.addf %5, %6 : vector<18x128xf32>
    %c17_i32 = arith.constant 17 : i32
    %8 = tpu.dynamic_rotate %5 by %c17_i32 dim 0 : vector<18x128xf32>, i32 -> vector<18x128xf32>
    %9 = arith.addf %7, %8 : vector<18x128xf32>
    %cst = arith.constant 9.000000e+00 : f32
    %10 = vector.broadcast %cst : f32 to vector<18x128xf32>
    %11 = arith.mulf %10, %1 : vector<18x128xf32>
    %12 = arith.subf %11, %9 : vector<18x128xf32>
    %cst_2 = arith.constant 1.000000e-01 : f32
    %13 = vector.broadcast %cst_2 : f32 to vector<18x128xf32>
    %14 = arith.cmpf ogt, %12, %13 : vector<18x128xf32>
    %cst_3 = arith.constant 1.000000e+00 : f32
    %cst_4 = arith.constant 0.000000e+00 : f32
    %15 = vector.broadcast %cst_3 : f32 to vector<18x128xf32>
    %16 = vector.broadcast %cst_4 : f32 to vector<18x128xf32>
    %17 = arith.select %14, %15, %16 : vector<18x128xi1>, vector<18x128xf32>
    %c0_5 = arith.constant 0 : index
    %c0_6 = arith.constant 0 : index
    %18 = vector.load %arg2[%c0_5, %c0_6] : memref<18x128xf32, #tpu.memory_space<vmem>>, vector<18x128xf32>
    tpu.vector_store %arg2[%c0_5, %c0_6], %17 {strides = array<i32>} : memref<18x128xf32, #tpu.memory_space<vmem>>, vector<18x128xf32>,
    return
  }
  func.func @transform_0(%arg0: i32) -> (i32, i32) {
    %c0_i32 = arith.constant 0 : i32
    %c0_i32_0 = arith.constant 0 : i32
    return %arg0, %c0_i32 : i32, i32
  }
  func.func @transform_1(%arg0: i32) -> (i32, i32) {
    %c0_i32 = arith.constant 0 : i32
    %c0_i32_0 = arith.constant 0 : i32
    return %arg0, %c0_i32 : i32, i32
  }
}

</mosaic_0001>

<llo_original>
// kernel: _boundary_pallas.1
$region0: #{_boundary_pallas.1}
  #allocation0 [shape = 'u32[]', space=smem, size = 0x4, offset = 0x4, fixed_abs, tag = 'smem constant byte address 0x4 - core index']
  #allocation1 [shape = 'u32[72,128]{1,0:T(1,128)}', space=vmem, size = 0x9000, scoped, tag = 'internal scratch']
  %s0 = inlined_call_operand.vmem [shape: bf16[18,128], index: 0, kind: input, shape index: {}]
  %s1 = inlined_call_operand.vmem [shape: f32[18,128], index: 1, kind: output, shape index: {}]
  %s2 = sld [smem:[#allocation0]]
  $region14: #{_boundary_pallas.1} parent=0
    _
  %s4 = ssub.s32 1, %s2
  %s5 = scalar_select 0, %s4, %s2
  // Predicated region
  $region2: #{_boundary_pallas.1} parent=0 // pred_check
    _
  $region3: #{_boundary_pallas.1} parent=0 // pred_check_branch
    %7 = sbr.rel (0) target = $region5
  $region4: #{_boundary_pallas.1} parent=0 // pred_region
    _
  $region5: #{_boundary_pallas.1} parent=0 // pred_fallthru
    _
  %v8 = vld [vmem:[%s0] sm:$0xf]
  %v9 = vld [vmem:[%s0 + $0x4] sm:$0xf]
  %v10 = vld [vmem:[%s0 + $0x8] sm:$0x1]
  %v11 = vunpack.c.l.bf16 %v8
  %v12 = vunpack.c.l.bf16 %v9
  %v13 = vunpack.c.l.bf16 %v10
  %14 = vrot.lane.b32.xlu0 %v11, 1
  %v15 = vpop.permute.xlu0 %14
  %16 = vrot.lane.b32.xlu0 %v12, 1
  %v17 = vpop.permute.xlu0 %16
  %18 = vrot.lane.b32.xlu0 %v13, 1
  %v19 = vpop.permute.xlu0 %18
  %v20 = vadd.f32 %v11, %v15
  %v21 = vadd.f32 %v12, %v17
  %v22 = vadd.f32 %v13, %v19
  %23 = vrot.lane.b32.xlu0 %v11, 127
  %v24 = vpop.permute.xlu0 %23
  %25 = vrot.lane.b32.xlu0 %v12, 127
  %v26 = vpop.permute.xlu0 %25
  %27 = vrot.lane.b32.xlu0 %v13, 127
  %v28 = vpop.permute.xlu0 %27
  %v29 = vadd.f32 %v20, %v24
  %v30 = vadd.f32 %v21, %v26
  %v31 = vadd.f32 %v22, %v28
  %vm32 = vcmask 1047554
  %v33 = vrot.slane %v29, 6
  %v34 = vsel %vm32, %v33, %v31
  %v35 = vrot.slane %v30, 6
  %v36 = vrot.slane %v34, 6
  %v37 = vsel %vm32, %v35, %v33
  %v38 = vsel %vm32, %v36, %v35
  %vm42 = vcmask 1046528
  %v43 = vrot.slane %v34, 1
  %v44 = vrot.slane %v37, 1
  %v45 = vsel %vm42, %v43, %v44
  %v46 = vrot.slane %v38, 1
  %v47 = vsel %vm42, %v44, %v46
  %v51 = vadd.f32 %v29, %v45
  %v52 = vadd.f32 %v30, %v47
  %v53 = vadd.f32 %v31, %v46
  %v56 = vrot.slane %v29, 1
  %v57 = vrot.slane %v30, 1
  %v58 = vsel %vm42, %v56, %v57
  %v59 = vsel %vm42, %v57, %v43
  %v63 = vadd.f32 %v51, %v58
  %v64 = vadd.f32 %v52, %v59
  %v65 = vadd.f32 %v53, %v43
  %v66 = vmul.f32 %v11, 9.0
  %v67 = vmul.f32 %v12, 9.0
  %v68 = vmul.f32 %v13, 9.0
  %v69 = vsub.f32 %v66, %v63
  %v70 = vsub.f32 %v67, %v64
  %v71 = vsub.f32 %v68, %v65
  %vm72 = vcmp.gt.f32.partialorder %v69, 0.1
  %vm73 = vcmp.gt.f32.partialorder %v70, 0.1
  %vm74 = vcmp.gt.f32.partialorder %v71, 0.1
  %v75 = vsel %vm72, 1.0, 0.0
  %v76 = vsel %vm73, 1.0, 0.0
  %v77 = vsel %vm74, 1.0, 0.0
  %78 = vst [vmem:[%s1] sm:$0xff] %v75
  %79 = vst [vmem:[%s1 + $0x8] sm:$0xff] %v76
  %80 = vst [vmem:[%s1 + $0x10] sm:$0x3] %v77
  // Predicated region
  $region6: #{_boundary_pallas.1} parent=0 // pred_check
    _
  $region7: #{_boundary_pallas.1} parent=0 // pred_check_branch
    %82 = sbr.rel (0) target = $region9
  $region8: #{_boundary_pallas.1} parent=0 // pred_region
    _
  $region9: #{_boundary_pallas.1} parent=0 // pred_fallthru
    _
  // Predicated region
  $region10: #{_boundary_pallas.1} parent=0 // pred_check
    _
  $region11: #{_boundary_pallas.1} parent=0 // pred_check_branch
    %84 = sbr.rel (0) target = $region13
  $region12: #{_boundary_pallas.1} parent=0 // pred_region
    _
  $region13: #{_boundary_pallas.1} parent=0 // pred_fallthru
    _

</llo_original>
